<compile_context>
chip_gen: v6e
topology: v6e:2x2x1
jax: 0.10.0
libtpu: 0.0.40
codegen_flags: <defaults>
</compile_context>

<pallas_src>
import functools

import jax
import jax.numpy as jnp
import numpy as np
from jax.experimental import pallas as pl
from jax.experimental.pallas import tpu as pltpu


def _make_harmonic_interp_matrix(anchor: int, f_kernel_size: int,
                                 n_freq: int) -> np.ndarray:
    """Stacked interpolation matrices, shape (K, F, F) float32.

    G[k-1] @ x == linear interp of x along freq at positions f * k / anchor,
    with out-of-range frequencies contributing zero.
    """
    G = np.zeros((f_kernel_size, n_freq, n_freq), dtype=np.float32)
    for k in range(1, f_kernel_size + 1):
        for f_out in range(n_freq):
            pos = f_out * k / anchor
            i0 = int(np.floor(pos))
            w = pos - i0
            if i0 < n_freq:
                G[k - 1, f_out, i0] += (1.0 - w)
            if w > 0.0 and (i0 + 1) < n_freq:
                G[k - 1, f_out, i0 + 1] += w
    return G


def _lowering_kernel(g_ref, x_ref, o_ref, *, k_size, n_freq, c_blk):
    # g_ref: (K*F, F)          resident across all grid steps (constant index_map)
    # x_ref: (1, Cblk, F, T)   one (batch, channel-block) freq-time slab
    # o_ref: (1, K, Cblk, F, T)
    g = g_ref[...]                                            # hoisted: (K*F, F)
    # Short, statically-bounded unrolled loop (c_blk is capped in the wrapper);
    # each iteration is one tall MXU matmul followed by an immediate store, so
    # live ranges stay small and the LLO scheduler can interleave freely.
    for c in range(c_blk):
        x_c = x_ref[0, c]                                     # (F, T)
        y = jnp.dot(g, x_c, preferred_element_type=jnp.float32)   # (K*F, T)
        o_ref[0, :, c, :, :] = (
            y.reshape(k_size, n_freq, y.shape[-1]).astype(o_ref.dtype))


def base_lowering(x: jnp.ndarray, *, anchor: int, f_kernel_size: int) -> jnp.ndarray:
    """Pallas implementation of BaseLowering.forward (groups=1, 'stack' layout).

    x: (batch, in_channels, freq, time)
    returns: (batch, in_channels * f_kernel_size, freq, time)
    """
    B, C, F, T = x.shape
    K = f_kernel_size
    itemsize = jnp.dtype(x.dtype).itemsize

    # All K harmonic interpolation matrices stacked as one (K*F, F) matrix.
    G = jnp.asarray(
        _make_harmonic_interp_matrix(anchor, K, F).reshape(K * F, F)
    ).astype(x.dtype)

    # Channel block: largest divisor of C such that
    #  (a) double-buffered x + out tiles (plus resident, double-buffered G) stay
    #      under a conservative scoped-VMEM budget (v7x has only 64 MiB physical),
    #  (b) the unrolled in-kernel channel loop stays short (<= 32 iterations).
    g_bytes = K * F * F * itemsize
    budget = (28 << 20) - 2 * g_bytes
    per_chan = 2 * (1 + K) * F * T * itemsize          # x + out, double-buffered
    cblk_cap = max(1, min(budget // max(per_chan, 1), 32))
    c_blk = 1
    for d in range(1, C + 1):
        if C % d == 0 and d <= cblk_cap:
            c_blk = d

    grid = (B, C // c_blk)

    x_blk_bytes = c_blk * F * T * itemsize
    o_blk_bytes = K * c_blk * F * T * itemsize
    vmem_needed = 2 * (g_bytes + x_blk_bytes + o_blk_bytes) + (1 << 20)
    vmem_limit = int(min(max(vmem_needed, 32 << 20), 64 << 20))

    kernel = functools.partial(_lowering_kernel, k_size=K, n_freq=F, c_blk=c_blk)

    cost = pl.CostEstimate(
        flops=2 * B * C * K * F * F * T,
        transcendentals=0,
        bytes_accessed=int((B * C * F * T + B * K * C * F * T + K * F * F)
                           * itemsize),
    )

    out = pl.pallas_call(
        kernel,
        out_shape=jax.ShapeDtypeStruct((B, K, C, F, T), x.dtype),
        grid_spec=pltpu.PrefetchScalarGridSpec(
            num_scalar_prefetch=0,
            grid=grid,
            in_specs=[
                # Full G, constant block index -> fetched once, stays in VMEM.
                pl.BlockSpec((K * F, F), lambda b, c: (0, 0)),
                # One (batch, channel-block) slab of x per grid step.
                pl.BlockSpec((1, c_blk, F, T), lambda b, c: (b, c, 0, 0)),
            ],
            out_specs=pl.BlockSpec((1, K, c_blk, F, T),
                                   lambda b, c: (b, 0, c, 0, 0)),
        ),
        compiler_params=pltpu.CompilerParams(
            dimension_semantics=("parallel", "parallel"),
            vmem_limit_bytes=vmem_limit),
        cost_estimate=cost,
    )(G, x)

    # 'stack' channel layout: lowered channel index = k * C + c, which is a
    # free contiguous reshape of the (B, K, C, F, T) output.
    return out.reshape(B, K * C, F, T)


def base_lowering_ref(x, *, anchor, f_kernel_size):
    """Pure-JAX reference (same semantics) for validation."""
    B, C, F, T = x.shape
    G = jnp.asarray(_make_harmonic_interp_matrix(anchor, f_kernel_size, F))
    # out[b, k*C + c, f, t] = sum_g G[k, f, g] x[b, c, g, t]
    y = jnp.einsum("kfg,bcgt->bkcft", G, x.astype(jnp.float32))
    return y.reshape(B, f_kernel_size * C, F, T).astype(x.dtype)


if __name__ == "__main__":
    key = jax.random.PRNGKey(0)
    B, C, F, T = 2, 4, 16, 16
    anchor = 2
    f_kernel_size = 3

    x = jax.random.normal(key, (B, C, F, T), dtype=jnp.float32)

    out = base_lowering(x, anchor=anchor, f_kernel_size=f_kernel_size)
    out = jax.block_until_ready(out)

    ref = base_lowering_ref(x, anchor=anchor, f_kernel_size=f_kernel_size)
    assert out.shape == (B, C * f_kernel_size, F, T), out.shape
    np.testing.assert_allclose(np.asarray(out), np.asarray(ref),
                               rtol=1e-5, atol=1e-5)

    print("KERNEL_OK")
</pallas_src>

<mosaic_0001>
module attributes {stable_mosaic.version = 11 : i64} {
  func.func @_lowering_kernel(%arg0: i32, %arg1: i32, %arg2: memref<48x16xf32, #tpu.memory_space<vmem>>, %arg3: memref<1x4x16x16xf32, #tpu.memory_space<vmem>>, %arg4: memref<1x3x4x16x16xf32, #tpu.memory_space<vmem>>) attributes {dimension_semantics = [#tpu.dimension_semantics<parallel>, #tpu.dimension_semantics<parallel>], iteration_bounds = array<i64: 2, 1>, scalar_prefetch = 0 : i64, scratch_operands = 0 : i64, tpu.core_type = #tpu.core_type<tc>, window_params = [{pipeline_mode = #tpu.pipeline_mode<synchronous>, transform_indices = @transform_0, window_bounds = array<i64: 48, 16>}, {transform_indices = @transform_1, window_bounds = array<i64: 1, 4, 16, 16>}, {transform_indices = @transform_2, window_bounds = array<i64: 1, 3, 4, 16, 16>}]} {
    %c0 = arith.constant 0 : index
    %c0_0 = arith.constant 0 : index
    %0 = vector.load %arg2[%c0, %c0_0] : memref<48x16xf32, #tpu.memory_space<vmem>>, vector<48x16xf32>
    %c0_1 = arith.constant 0 : index
    %c0_2 = arith.constant 0 : index
    %c0_3 = arith.constant 0 : index
    %c0_4 = arith.constant 0 : index
    %1 = vector.load %arg3[%c0_1, %c0_2, %c0_3, %c0_4] : memref<1x4x16x16xf32, #tpu.memory_space<vmem>>, vector<1x1x16x16xf32>
    %2 = vector.shape_cast %1 : vector<1x1x16x16xf32> to vector<16x16xf32>
    %cst = arith.constant dense<0.000000e+00> : vector<48x16xf32>
    %3 = tpu.matmul %0, %2, %cst {dimension_numbers = #tpu.dot_dimension_numbers<[1], [0], [0], [1], [0, 0, 1, 1], [], []>} : vector<48x16xf32>, vector<16x16xf32>, vector<48x16xf32> -> vector<48x16xf32>
    %4 = vector.shape_cast %3 : vector<48x16xf32> to vector<3x16x16xf32>
    %c0_5 = arith.constant 0 : index
    %c0_6 = arith.constant 0 : index
    %c0_7 = arith.constant 0 : index
    %c0_8 = arith.constant 0 : index
    %c0_9 = arith.constant 0 : index
    %5 = vector.load %arg4[%c0_5, %c0_6, %c0_7, %c0_8, %c0_9] : memref<1x3x4x16x16xf32, #tpu.memory_space<vmem>>, vector<1x3x1x16x16xf32>
    %6 = vector.shape_cast %5 : vector<1x3x1x16x16xf32> to vector<3x16x16xf32>
    %7 = vector.shape_cast %4 : vector<3x16x16xf32> to vector<1x3x1x16x16xf32>
    tpu.vector_store %arg4[%c0_5, %c0_6, %c0_7, %c0_8, %c0_9], %7 {strides = array<i32>} : memref<1x3x4x16x16xf32, #tpu.memory_space<vmem>>, vector<1x3x1x16x16xf32>,
    %c0_10 = arith.constant 0 : index
    %c1 = arith.constant 1 : index
    %c0_11 = arith.constant 0 : index
    %c0_12 = arith.constant 0 : index
    %8 = vector.load %arg3[%c0_10, %c1, %c0_11, %c0_12] : memref<1x4x16x16xf32, #tpu.memory_space<vmem>>, vector<1x1x16x16xf32>
    %9 = vector.shape_cast %8 : vector<1x1x16x16xf32> to vector<16x16xf32>
    %cst_13 = arith.constant dense<0.000000e+00> : vector<48x16xf32>
    %10 = tpu.matmul %0, %9, %cst_13 {dimension_numbers = #tpu.dot_dimension_numbers<[1], [0], [0], [1], [0, 0, 1, 1], [], []>} : vector<48x16xf32>, vector<16x16xf32>, vector<48x16xf32> -> vector<48x16xf32>
    %11 = vector.shape_cast %10 : vector<48x16xf32> to vector<3x16x16xf32>
    %c0_14 = arith.constant 0 : index
    %c0_15 = arith.constant 0 : index
    %c1_16 = arith.constant 1 : index
    %c0_17 = arith.constant 0 : index
    %c0_18 = arith.constant 0 : index
    %12 = vector.load %arg4[%c0_14, %c0_15, %c1_16, %c0_17, %c0_18] : memref<1x3x4x16x16xf32, #tpu.memory_space<vmem>>, vector<1x3x1x16x16xf32>
    %13 = vector.shape_cast %12 : vector<1x3x1x16x16xf32> to vector<3x16x16xf32>
    %14 = vector.shape_cast %11 : vector<3x16x16xf32> to vector<1x3x1x16x16xf32>
    tpu.vector_store %arg4[%c0_14, %c0_15, %c1_16, %c0_17, %c0_18], %14 {strides = array<i32>} : memref<1x3x4x16x16xf32, #tpu.memory_space<vmem>>, vector<1x3x1x16x16xf32>,
    %c0_19 = arith.constant 0 : index
    %c2 = arith.constant 2 : index
    %c0_20 = arith.constant 0 : index
    %c0_21 = arith.constant 0 : index
    %15 = vector.load %arg3[%c0_19, %c2, %c0_20, %c0_21] : memref<1x4x16x16xf32, #tpu.memory_space<vmem>>, vector<1x1x16x16xf32>
    %16 = vector.shape_cast %15 : vector<1x1x16x16xf32> to vector<16x16xf32>
    %cst_22 = arith.constant dense<0.000000e+00> : vector<48x16xf32>
    %17 = tpu.matmul %0, %16, %cst_22 {dimension_numbers = #tpu.dot_dimension_numbers<[1], [0], [0], [1], [0, 0, 1, 1], [], []>} : vector<48x16xf32>, vector<16x16xf32>, vector<48x16xf32> -> vector<48x16xf32>
    %18 = vector.shape_cast %17 : vector<48x16xf32> to vector<3x16x16xf32>
    %c0_23 = arith.constant 0 : index
    %c0_24 = arith.constant 0 : index
    %c2_25 = arith.constant 2 : index
    %c0_26 = arith.constant 0 : index
    %c0_27 = arith.constant 0 : index
    %19 = vector.load %arg4[%c0_23, %c0_24, %c2_25, %c0_26, %c0_27] : memref<1x3x4x16x16xf32, #tpu.memory_space<vmem>>, vector<1x3x1x16x16xf32>
    %20 = vector.shape_cast %19 : vector<1x3x1x16x16xf32> to vector<3x16x16xf32>
    %21 = vector.shape_cast %18 : vector<3x16x16xf32> to vector<1x3x1x16x16xf32>
    tpu.vector_store %arg4[%c0_23, %c0_24, %c2_25, %c0_26, %c0_27], %21 {strides = array<i32>} : memref<1x3x4x16x16xf32, #tpu.memory_space<vmem>>, vector<1x3x1x16x16xf32>,
    %c0_28 = arith.constant 0 : index
    %c3 = arith.constant 3 : index
    %c0_29 = arith.constant 0 : index
    %c0_30 = arith.constant 0 : index
    %22 = vector.load %arg3[%c0_28, %c3, %c0_29, %c0_30] : memref<1x4x16x16xf32, #tpu.memory_space<vmem>>, vector<1x1x16x16xf32>
    %23 = vector.shape_cast %22 : vector<1x1x16x16xf32> to vector<16x16xf32>
    %cst_31 = arith.constant dense<0.000000e+00> : vector<48x16xf32>
    %24 = tpu.matmul %0, %23, %cst_31 {dimension_numbers = #tpu.dot_dimension_numbers<[1], [0], [0], [1], [0, 0, 1, 1], [], []>} : vector<48x16xf32>, vector<16x16xf32>, vector<48x16xf32> -> vector<48x16xf32>
    %25 = vector.shape_cast %24 : vector<48x16xf32> to vector<3x16x16xf32>
    %c0_32 = arith.constant 0 : index
    %c0_33 = arith.constant 0 : index
    %c3_34 = arith.constant 3 : index
    %c0_35 = arith.constant 0 : index
    %c0_36 = arith.constant 0 : index
    %26 = vector.load %arg4[%c0_32, %c0_33, %c3_34, %c0_35, %c0_36] : memref<1x3x4x16x16xf32, #tpu.memory_space<vmem>>, vector<1x3x1x16x16xf32>
    %27 = vector.shape_cast %26 : vector<1x3x1x16x16xf32> to vector<3x16x16xf32>
    %28 = vector.shape_cast %25 : vector<3x16x16xf32> to vector<1x3x1x16x16xf32>
    tpu.vector_store %arg4[%c0_32, %c0_33, %c3_34, %c0_35, %c0_36], %28 {strides = array<i32>} : memref<1x3x4x16x16xf32, #tpu.memory_space<vmem>>, vector<1x3x1x16x16xf32>,
    return
  }
  func.func @transform_0(%arg0: i32, %arg1: i32) -> (i32, i32) {
    %c0_i32 = arith.constant 0 : i32
    %c0_i32_0 = arith.constant 0 : i32
    %c0_i32_1 = arith.constant 0 : i32
    return %c0_i32, %c0_i32_0 : i32, i32
  }
  func.func @transform_1(%arg0: i32, %arg1: i32) -> (i32, i32, i32, i32) {
    %c0_i32 = arith.constant 0 : i32
    %c0_i32_0 = arith.constant 0 : i32
    %c0_i32_1 = arith.constant 0 : i32
    return %arg0, %arg1, %c0_i32, %c0_i32_0 : i32, i32, i32, i32
  }
  func.func @transform_2(%arg0: i32, %arg1: i32) -> (i32, i32, i32, i32, i32) {
    %c0_i32 = arith.constant 0 : i32
    %c0_i32_0 = arith.constant 0 : i32
    %c0_i32_1 = arith.constant 0 : i32
    %c0_i32_2 = arith.constant 0 : i32
    return %arg0, %c0_i32, %arg1, %c0_i32_0, %c0_i32_1 : i32, i32, i32, i32, i32
  }
}

</mosaic_0001>

<llo_original>
// kernel: tpu_custom_call.1
$region0: #{tpu_custom_call.1}
  #allocation0 [shape = 'u32[]', space=smem, size = 0x4, offset = 0x4, fixed_abs, tag = 'smem constant byte address 0x4 - core index']
  #allocation1 [shape = 'u32[144,128]{1,0:T(1,128)}', space=vmem, size = 0x12000, scoped, tag = 'internal scratch']
  %s0 = inlined_call_operand.vmem [shape: f32[48,16], index: 0, kind: input, shape index: {}]
  %s1 = inlined_call_operand.hbm [shape: f32[2,4,16,16], index: 1, kind: input, shape index: {}]
  %s2 = inlined_call_operand.hbm [shape: f32[2,3,4,16,16], index: 2, kind: output, shape index: {}]
  %s3 = sld [smem:[#allocation0]]
  $region45: #{tpu_custom_call.1} parent=0
    _
  %s5 = ssub.s32 1, %s3
  %s6 = scalar_select 0, %s5, %s3
  $region1: #{tpu_custom_call.1} parent=0
    #allocation2 [shape = 'u8[65536]{0}', space=vmem, size = 0x10000, scoped, tag = 'input window, operand 1']
    #allocation3 [shape = 's32[2]{0}', space=sflag, size = 0x8, scoped, tag = 'scoped memory for tpu_custom_call.1']
    #allocation4 [shape = 's32[2]{0}', space=sflag, size = 0x8, scoped, tag = 'scoped memory for tpu_custom_call.1']
    #allocation5 [shape = 'u8[196608]{0}', space=vmem, size = 0x30000, scoped, tag = 'output window, operand 0']
    %7 = vsyncpa [#allocation3], 0
    %s8 = scalar_lea.sflag [#allocation3], 1
    %9 = vsyncpa %s8, 0
    %10 = vsyncpa [#allocation4], 0
    %s11 = scalar_lea.sflag [#allocation4], 1
    %12 = vsyncpa %s11, 0
    loop: start=0, step=1, limit=4
    $region2: #{tpu_custom_call.1} parent=1 // loop_pre_header
      _
    $region3: #{tpu_custom_call.1} parent=1 // loop_header
      %s14 = sphi 0, %s18
      %p15 = scmp.ge.s32.totalorder %s14, 4
      %s21 = sphi 0, %s33
      %s22 = sphi 0, %s29
      %s23 = sphi 0, %s21
      %s24 = sphi 0, %s22
      %s25 = sphi 0, %s23
      %s26 = sphi 0, %s24
      %s34 = sphi 0, %s34
      %s36 = sphi 0, %s34
      %s37 = sphi 0, %s36
      %s51 = sphi 0, %s37
      %s59 = sphi 0, %s61
      %s62 = sphi 0, %s59
      %s63 = sphi 0, %s62
      %s79 = sphi 0, %s63
      %s87 = sphi 0, %s89
      %s90 = sphi 0, %s87
      %s91 = sphi 0, %s90
      %s107 = sphi 0, %s91
    $region4: #{tpu_custom_call.1} parent=1 // loop_header_branch
      %17 = sbr.rel (%p15) target = $region8
    $region5: #{tpu_custom_call.1} parent=1 // loop_body
      %s19 = ssub.s32 %s14, 1
      %s20 = ssub.s32 %s14, 2
      %s27 = sadd.s32 1, %s22
      %p28 = scmp.ge.s32.totalorder %s27, 1
      %s29 = scalar_select %p28, 0, %s27
      %s30 = sadd.s32 1, %s21
      %s31 = scalar_select %p28, %s30, %s21
      %p32 = scmp.ge.s32.totalorder %s31, 2
      %s33 = scalar_select %p32, 0, %s31
      %s35 = sadd.s32 %s34, 1
      %p38 = scmp.eq.s32.totalorder %s14, 1
      %p39 = scmp.ne.s32.totalorder %s34, %s36
      %p40 = scmp.eq.s32.totalorder %s14, 0
      %p41 = por %p39, %p40
      %p42 = scmp.ne.s32.totalorder %s34, %s36
      %p43 = scmp.eq.s32.totalorder %s19, 1
      %p44 = por %p42, %p43
      %p45 = scmp.ne.s32.totalorder %s36, %s37
      %p46 = scmp.eq.s32.totalorder %s19, 0
      %p47 = por %p45, %p46
      %p48 = scmp.ne.s32.totalorder %s36, %s37
      %p49 = scmp.eq.s32.totalorder %s20, 1
      %p50 = por %p48, %p49
      %p52 = scmp.ne.s32.totalorder %s37, %s51
      %p53 = scmp.eq.s32.totalorder %s20, 0
      %p54 = por %p52, %p53
      %s55 = ssub.s32 %s21, %s33
      %s56 = ssub.s32 %s22, %s29
      %s57 = sor.u32 %s55, %s56
      %p58 = scmp.eq.s32.totalorder %s57, 0
      %s60 = sadd.s32 %s59, 1
      %s61 = scalar_select %p58, %s59, %s60
      %p64 = pneg %p58
      %p65 = scmp.eq.s32.totalorder %s14, 1
      %p66 = por %p64, %p65
      %p67 = scmp.ne.s32.totalorder %s59, %s62
      %p68 = scmp.eq.s32.totalorder %s14, 0
      %p69 = por %p67, %p68
      %p70 = scmp.ne.s32.totalorder %s59, %s62
      %p71 = scmp.eq.s32.totalorder %s19, 1
      %p72 = por %p70, %p71
      %p73 = scmp.ne.s32.totalorder %s62, %s63
      %p74 = scmp.eq.s32.totalorder %s19, 0
      %p75 = por %p73, %p74
      %p76 = scmp.ne.s32.totalorder %s62, %s63
      %p77 = scmp.eq.s32.totalorder %s20, 1
      %p78 = por %p76, %p77
      %p80 = scmp.ne.s32.totalorder %s63, %s79
      %p81 = scmp.eq.s32.totalorder %s20, 0
      %p82 = por %p80, %p81
      %s83 = ssub.s32 %s21, %s33
      %s84 = ssub.s32 %s22, %s29
      %s85 = sor.u32 %s83, %s84
      %p86 = scmp.eq.s32.totalorder %s85, 0
      %s88 = sadd.s32 %s87, 1
      %s89 = scalar_select %p86, %s87, %s88
      %p92 = pneg %p86
      %p93 = scmp.eq.s32.totalorder %s14, 1
      %p94 = por %p92, %p93
      %p95 = scmp.ne.s32.totalorder %s87, %s90
      %p96 = scmp.eq.s32.totalorder %s14, 0
      %p97 = por %p95, %p96
      %p98 = scmp.ne.s32.totalorder %s87, %s90
      %p99 = scmp.eq.s32.totalorder %s19, 1
      %p100 = por %p98, %p99
      %p101 = scmp.ne.s32.totalorder %s90, %s91
      %p102 = scmp.eq.s32.totalorder %s19, 0
      %p103 = por %p101, %p102
      %p104 = scmp.ne.s32.totalorder %s90, %s91
      %p105 = scmp.eq.s32.totalorder %s20, 1
      %p106 = por %p104, %p105
      %p108 = scmp.ne.s32.totalorder %s91, %s107
      %p109 = scmp.eq.s32.totalorder %s20, 0
      %p110 = por %p108, %p109
      %p111 = scmp.le.s32.totalorder 1, %s14
      %p112 = scmp.lt.s32.totalorder %s14, 3
      %p113 = pnand %p111, %p112
      %p114 = pneg %p113
      // Predicated region
      $region9: #{tpu_custom_call.1} parent=5 // pred_check
        _
      $region10: #{tpu_custom_call.1} parent=5 // pred_check_branch
        %116 = sbr.rel (%p113) target = $region12
      $region11: #{tpu_custom_call.1} parent=5 // pred_region
        %s117 = ssub.s32 %s14, 1
        // Predicated region
        $region13: #{tpu_custom_call.1} parent=11 // pred_check
          %p118 = pneg %p47
        $region14: #{tpu_custom_call.1} parent=11 // pred_check_branch
          %120 = sbr.rel (%p118) target = $region16
        $region15: #{tpu_custom_call.1} parent=11 // pred_region
          _
        $region16: #{tpu_custom_call.1} parent=11 // pred_fallthru
          _
      $region12: #{tpu_custom_call.1} parent=5 // pred_fallthru
        _
      %p121 = scmp.lt.s32.totalorder %s14, 2
      // Predicated region
      $region17: #{tpu_custom_call.1} parent=5 // pred_check
        %p122 = pneg %p121
      $region18: #{tpu_custom_call.1} parent=5 // pred_check_branch
        %124 = sbr.rel (%p122) target = $region20
      $region19: #{tpu_custom_call.1} parent=5 // pred_region
        // Predicated region
        $region21: #{tpu_custom_call.1} parent=19 // pred_check
          %p125 = pneg %p69
        $region22: #{tpu_custom_call.1} parent=19 // pred_check_branch
          %127 = sbr.rel (%p125) target = $region24
        $region23: #{tpu_custom_call.1} parent=19 // pred_region
          %s128 = sand.u32 %s59, 1
          %s129 = scalar_lea.sflag [#allocation3], %s128
          %s130 = sand.u32 %s59, 1
          %s131 = smul.addr %s130, 64
          %s132 = scalar_lea.vmem [#allocation2], %s131
          %s133 = smul.u32 4, %s22
          %s135 = ssub.s32 1024, 1024
          %136 = vsyncadd %s129, %s135
          %s137 = smul.addr %s133, 2
          %s138 = smul.addr %s21, 8
          %s139 = sadd.s32 %s137, %s138
          %s140 = smul.addr %s139, 128
          %s141 = scalar_lea.hbm %s1, %s140
          %s142 = sshll.u32 %s132, 4
          %s143 = int_to_ptr.vmem [resolvable:$true] %s142
          %148 = dma.hbm_to_vmem [thread:$0]  %s141, 1024, %s143, %s129, 128, 128, 8
        $region24: #{tpu_custom_call.1} parent=19 // pred_fallthru
          _
      $region20: #{tpu_custom_call.1} parent=5 // pred_fallthru
        _
      %p149 = scmp.le.s32.totalorder 1, %s14
      %p150 = scmp.lt.s32.totalorder %s14, 3
      %p151 = pnand %p149, %p150
      %p152 = pneg %p151
      // Predicated region
      $region25: #{tpu_custom_call.1} parent=5 // pred_check
        _
      $region26: #{tpu_custom_call.1} parent=5 // pred_check_branch
        %154 = sbr.rel (%p151) target = $region28
      $region27: #{tpu_custom_call.1} parent=5 // pred_region
        %s155 = ssub.s32 %s14, 1
        %s156 = sand.u32 %s62, 1
        %s157 = scalar_lea.sflag [#allocation3], %s156
        %s158 = sand.u32 %s62, 1
        %s159 = smul.addr %s158, 64
        %s160 = scalar_lea.vmem [#allocation2], %s159
        // Predicated region
        $region29: #{tpu_custom_call.1} parent=27 // pred_check
          %p161 = pneg %p75
        $region30: #{tpu_custom_call.1} parent=27 // pred_check_branch
          %163 = sbr.rel (%p161) target = $region32
        $region31: #{tpu_custom_call.1} parent=27 // pred_region
          %164 = dma.done %s157, 1024
        $region32: #{tpu_custom_call.1} parent=27 // pred_fallthru
          _
        %p165 = pneg %p47
        %p166 = pneg %p44
        %s167 = sand.u32 %s62, 1
        %s168 = scalar_lea.sflag [#allocation3], %s167
        %s169 = sand.u32 %s62, 1
        %s170 = smul.addr %s169, 64
        %s171 = scalar_lea.vmem [#allocation2], %s170
        %p172 = pneg %p75
        %p173 = pneg %p72
        %p174 = pneg %p103
        %p175 = pneg %p100
        %s176 = sand.u32 %s90, 1
        %s177 = scalar_lea.sflag [#allocation4], %s176
        %s178 = sand.u32 %s90, 1
        %s179 = smul.addr %s178, 192
        %s180 = scalar_lea.vmem [#allocation5], %s179
        %s181 = smul.u32 4, %s24
        %s182 = smul.u32 4, %s24
        %v183 = vld [vmem:[%s0] sm:$0xff]
        %v184 = vld [vmem:[%s0 + $0x8] sm:$0xff]
        %v185 = vld [vmem:[%s0 + $0x10] sm:$0xff]
        %v186 = vld [vmem:[%s0 + $0x18] sm:$0xff]
        %v187 = vld [vmem:[%s0 + $0x20] sm:$0xff]
        %v188 = vld [vmem:[%s0 + $0x28] sm:$0xff]
        %v189 = vld [vmem:[%s160] sm:$0xff]
        %v190 = vld [vmem:[%s160 + $0x8] sm:$0xff]
        %vm191 = vcmask 130048
        %v193 = vsel %vm191, %v183, 0
        %v196 = vsel %vm191, %v184, 0
        %v199 = vsel %vm191, %v185, 0
        %v202 = vsel %vm191, %v186, 0
        %v205 = vsel %vm191, %v187, 0
        %v208 = vsel %vm191, %v188, 0
        %210 = vmatprep.subr.mxu0 0.0
        %211 = vmatpush1.msra.mxu0 0.0
        %212 = vmatprep.subr.mxu0 0.0
        %213 = vmatpush1.msra.mxu0 0.0
        %214 = vmatprep.subr.mxu0 0.0
        %215 = vmatpush1.msra.mxu0 0.0
        %216 = vmatprep.subr.mxu0 0.0
        %217 = vmatpush1.msra.mxu0 0.0
        %218 = vmatprep.subr.mxu0 0.0
        %219 = vmatpush1.msra.mxu0 0.0
        %220 = vmatprep.subr.mxu0 0.0
        %221 = vmatpush1.msra.mxu0 0.0
        %222 = vmatprep.subr.mxu0 0.0
        %223 = vmatpush1.msra.mxu0 0.0
        %224 = vmatprep.subr.mxu0 0.0
        %225 = vmatpush1.msra.mxu0 0.0
        %226 = vmatprep.subr.mxu0 0.0
        %227 = vmatpush1.msra.mxu0 0.0
        %228 = vmatprep.subr.mxu0 0.0
        %229 = vmatpush1.msra.mxu0 0.0
        %230 = vmatprep.subr.mxu0 0.0
        %231 = vmatpush1.msra.mxu0 0.0
        %232 = vmatprep.subr.mxu0 0.0
        %233 = vmatpush1.msra.mxu0 0.0
        %234 = vmatprep.subr.mxu0 0.0
        %235 = vmatpush1.msra.mxu0 0.0
        %236 = vmatprep.subr.mxu0 0.0
        %237 = vmatpush1.msra.mxu0 0.0
        %238 = vmatprep.subr.mxu0 0.0
        %239 = vmatpush1.msra.mxu0 %v190
        %240 = vmatprep.subr.mxu0 0.0
        %241 = vmatpush1.msra.mxu0 %v189
        %242 = vmatprep.subr.mxu0 0.0
        %243 = vmatpush2.msra.mxu0 0.0
        %244 = vmatprep.subr.mxu0 0.0
        %245 = vmatpush2.msra.mxu0 0.0
        %246 = vmatprep.subr.mxu0 0.0
        %247 = vmatpush2.msra.mxu0 0.0
        %248 = vmatprep.subr.mxu0 0.0
        %249 = vmatpush2.msra.mxu0 0.0
        %250 = vmatprep.subr.mxu0 0.0
        %251 = vmatpush2.msra.mxu0 0.0
        %252 = vmatprep.subr.mxu0 0.0
        %253 = vmatpush2.msra.mxu0 0.0
        %254 = vmatprep.subr.mxu0 0.0
        %255 = vmatpush2.msra.mxu0 0.0
        %256 = vmatprep.subr.mxu0 0.0
        %257 = vmatpush2.msra.mxu0 0.0
        %258 = vmatprep.subr.mxu0 0.0
        %259 = vmatpush2.msra.mxu0 0.0
        %260 = vmatprep.subr.mxu0 0.0
        %261 = vmatpush2.msra.mxu0 0.0
        %262 = vmatprep.subr.mxu0 0.0
        %263 = vmatpush2.msra.mxu0 0.0
        %264 = vmatprep.subr.mxu0 0.0
        %265 = vmatpush2.msra.mxu0 0.0
        %266 = vmatprep.subr.mxu0 0.0
        %267 = vmatpush2.msra.mxu0 0.0
        %268 = vmatprep.subr.mxu0 0.0
        %269 = vmatpush2.msra.mxu0 0.0
        %270 = vmatprep.subr.mxu0 0.0
        %271 = vmatpush2.msra.mxu0 0.0
        %272 = vmatprep.subr.mxu0 0.0
        %273 = vmatpush2.msra.mxu0 0.0
        %274 = vmatprep.mubr.f32.mxu0 0.0
        %275 = vmatmul.mubr.f32.gmra.mxu0 %v193
        %v276 = vpop.f32.mrf.mxu0
        %v277 = vadd.f32 0.0, %v276
        %v278 = vpop.f32.mrf.mxu0
        %279 = vmatprep.mubr.f32.mxu0 0.0
        %280 = vmatmul.mubr.f32.gmra.mxu0 %v196
        %v281 = vpop.f32.mrf.mxu0
        %v282 = vadd.f32 0.0, %v281
        %v283 = vpop.f32.mrf.mxu0
        %284 = vmatprep.mubr.f32.mxu0 0.0
        %285 = vmatmul.mubr.f32.gmra.mxu0 %v199
        %v286 = vpop.f32.mrf.mxu0
        %v287 = vadd.f32 0.0, %v286
        %v288 = vpop.f32.mrf.mxu0
        %289 = vmatprep.mubr.f32.mxu0 0.0
        %290 = vmatmul.mubr.f32.gmra.mxu0 %v202
        %v291 = vpop.f32.mrf.mxu0
        %v292 = vadd.f32 0.0, %v291
        %v293 = vpop.f32.mrf.mxu0
        %294 = vmatprep.mubr.f32.mxu0 0.0
        %295 = vmatmul.mubr.f32.gmra.mxu0 %v205
        %v296 = vpop.f32.mrf.mxu0
        %v297 = vadd.f32 0.0, %v296
        %v298 = vpop.f32.mrf.mxu0
        %299 = vmatprep.mubr.f32.mxu0 0.0
        %300 = vmatmul.mubr.f32.gmra.mxu0 %v208
        %v301 = vpop.f32.mrf.mxu0
        %v302 = vadd.f32 0.0, %v301
        %v303 = vpop.f32.mrf.mxu0
        %304 = vdwg.mxu0
        %305 = vst.msk [vmem:[%s180] sm:$0xff] %vm191, %v277
        %306 = vst.msk [vmem:[%s180 + $0x8] sm:$0xff] %vm191, %v282
        %307 = vst.msk [vmem:[%s180 + $0x40] sm:$0xff] %vm191, %v287
        %308 = vst.msk [vmem:[%s180 + $0x48] sm:$0xff] %vm191, %v292
        %309 = vst.msk [vmem:[%s180 + $0x80] sm:$0xff] %vm191, %v297
        %310 = vst.msk [vmem:[%s180 + $0x88] sm:$0xff] %vm191, %v302
        %s311 = scalar_lea.vmem %s160, 16 [#allocation2]
        %v312 = vld [vmem:[%s311] sm:$0xff]
        %v313 = vld [vmem:[%s311 + $0x8] sm:$0xff]
        %314 = vmatprep.subr.mxu0 0.0
        %315 = vmatpush1.msra.mxu0 0.0
        %316 = vmatprep.subr.mxu0 0.0
        %317 = vmatpush1.msra.mxu0 0.0
        %318 = vmatprep.subr.mxu0 0.0
        %319 = vmatpush1.msra.mxu0 0.0
        %320 = vmatprep.subr.mxu0 0.0
        %321 = vmatpush1.msra.mxu0 0.0
        %322 = vmatprep.subr.mxu0 0.0
        %323 = vmatpush1.msra.mxu0 0.0
        %324 = vmatprep.subr.mxu0 0.0
        %325 = vmatpush1.msra.mxu0 0.0
        %326 = vmatprep.subr.mxu0 0.0
        %327 = vmatpush1.msra.mxu0 0.0
        %328 = vmatprep.subr.mxu0 0.0
        %329 = vmatpush1.msra.mxu0 0.0
        %330 = vmatprep.subr.mxu0 0.0
        %331 = vmatpush1.msra.mxu0 0.0
        %332 = vmatprep.subr.mxu0 0.0
        %333 = vmatpush1.msra.mxu0 0.0
        %334 = vmatprep.subr.mxu0 0.0
        %335 = vmatpush1.msra.mxu0 0.0
        %336 = vmatprep.subr.mxu0 0.0
        %337 = vmatpush1.msra.mxu0 0.0
        %338 = vmatprep.subr.mxu0 0.0
        %339 = vmatpush1.msra.mxu0 0.0
        %340 = vmatprep.subr.mxu0 0.0
        %341 = vmatpush1.msra.mxu0 0.0
        %342 = vmatprep.subr.mxu0 0.0
        %343 = vmatpush1.msra.mxu0 %v313
        %344 = vmatprep.subr.mxu0 0.0
        %345 = vmatpush1.msra.mxu0 %v312
        %346 = vmatprep.subr.mxu0 0.0
        %347 = vmatpush2.msra.mxu0 0.0
        %348 = vmatprep.subr.mxu0 0.0
        %349 = vmatpush2.msra.mxu0 0.0
        %350 = vmatprep.subr.mxu0 0.0
        %351 = vmatpush2.msra.mxu0 0.0
        %352 = vmatprep.subr.mxu0 0.0
        %353 = vmatpush2.msra.mxu0 0.0
        %354 = vmatprep.subr.mxu0 0.0
        %355 = vmatpush2.msra.mxu0 0.0
        %356 = vmatprep.subr.mxu0 0.0
        %357 = vmatpush2.msra.mxu0 0.0
        %358 = vmatprep.subr.mxu0 0.0
        %359 = vmatpush2.msra.mxu0 0.0
        %360 = vmatprep.subr.mxu0 0.0
        %361 = vmatpush2.msra.mxu0 0.0
        %362 = vmatprep.subr.mxu0 0.0
        %363 = vmatpush2.msra.mxu0 0.0
        %364 = vmatprep.subr.mxu0 0.0
        %365 = vmatpush2.msra.mxu0 0.0
        %366 = vmatprep.subr.mxu0 0.0
        %367 = vmatpush2.msra.mxu0 0.0
        %368 = vmatprep.subr.mxu0 0.0
        %369 = vmatpush2.msra.mxu0 0.0
        %370 = vmatprep.subr.mxu0 0.0
        %371 = vmatpush2.msra.mxu0 0.0
        %372 = vmatprep.subr.mxu0 0.0
        %373 = vmatpush2.msra.mxu0 0.0
        %374 = vmatprep.subr.mxu0 0.0
        %375 = vmatpush2.msra.mxu0 0.0
        %376 = vmatprep.subr.mxu0 0.0
        %377 = vmatpush2.msra.mxu0 0.0
        %378 = vmatprep.mubr.f32.mxu0 0.0
        %379 = vmatmul.mubr.f32.gmra.mxu0 %v193
        %v380 = vpop.f32.mrf.mxu0
        %v381 = vadd.f32 0.0, %v380
        %v382 = vpop.f32.mrf.mxu0
        %383 = vmatprep.mubr.f32.mxu0 0.0
        %384 = vmatmul.mubr.f32.gmra.mxu0 %v196
        %v385 = vpop.f32.mrf.mxu0
        %v386 = vadd.f32 0.0, %v385
        %v387 = vpop.f32.mrf.mxu0
        %388 = vmatprep.mubr.f32.mxu0 0.0
        %389 = vmatmul.mubr.f32.gmra.mxu0 %v199
        %v390 = vpop.f32.mrf.mxu0
        %v391 = vadd.f32 0.0, %v390
        %v392 = vpop.f32.mrf.mxu0
        %393 = vmatprep.mubr.f32.mxu0 0.0
        %394 = vmatmul.mubr.f32.gmra.mxu0 %v202
        %v395 = vpop.f32.mrf.mxu0
        %v396 = vadd.f32 0.0, %v395
        %v397 = vpop.f32.mrf.mxu0
        %398 = vmatprep.mubr.f32.mxu0 0.0
        %399 = vmatmul.mubr.f32.gmra.mxu0 %v205
        %v400 = vpop.f32.mrf.mxu0
        %v401 = vadd.f32 0.0, %v400
        %v402 = vpop.f32.mrf.mxu0
        %403 = vmatprep.mubr.f32.mxu0 0.0
        %404 = vmatmul.mubr.f32.gmra.mxu0 %v208
        %v405 = vpop.f32.mrf.mxu0
        %v406 = vadd.f32 0.0, %v405
        %v407 = vpop.f32.mrf.mxu0
        %408 = vdwg.mxu0
        %s409 = scalar_lea.vmem %s180, 16 [#allocation5]
        %410 = vst.msk [vmem:[%s409] sm:$0xff] %vm191, %v381
        %411 = vst.msk [vmem:[%s409 + $0x8] sm:$0xff] %vm191, %v386
        %412 = vst.msk [vmem:[%s409 + $0x40] sm:$0xff] %vm191, %v391
        %413 = vst.msk [vmem:[%s409 + $0x48] sm:$0xff] %vm191, %v396
        %414 = vst.msk [vmem:[%s409 + $0x80] sm:$0xff] %vm191, %v401
        %415 = vst.msk [vmem:[%s409 + $0x88] sm:$0xff] %vm191, %v406
        %s416 = scalar_lea.vmem %s160, 32 [#allocation2]
        %v417 = vld [vmem:[%s416] sm:$0xff]
        %v418 = vld [vmem:[%s416 + $0x8] sm:$0xff]
        %419 = vmatprep.subr.mxu0 0.0
        %420 = vmatpush1.msra.mxu0 0.0
        %421 = vmatprep.subr.mxu0 0.0
        %422 = vmatpush1.msra.mxu0 0.0
        %423 = vmatprep.subr.mxu0 0.0
        %424 = vmatpush1.msra.mxu0 0.0
        %425 = vmatprep.subr.mxu0 0.0
        %426 = vmatpush1.msra.mxu0 0.0
        %427 = vmatprep.subr.mxu0 0.0
        %428 = vmatpush1.msra.mxu0 0.0
        %429 = vmatprep.subr.mxu0 0.0
        %430 = vmatpush1.msra.mxu0 0.0
        %431 = vmatprep.subr.mxu0 0.0
        %432 = vmatpush1.msra.mxu0 0.0
        %433 = vmatprep.subr.mxu0 0.0
        %434 = vmatpush1.msra.mxu0 0.0
        %435 = vmatprep.subr.mxu0 0.0
        %436 = vmatpush1.msra.mxu0 0.0
        %437 = vmatprep.subr.mxu0 0.0
        %438 = vmatpush1.msra.mxu0 0.0
        %439 = vmatprep.subr.mxu0 0.0
        %440 = vmatpush1.msra.mxu0 0.0
        %441 = vmatprep.subr.mxu0 0.0
        %442 = vmatpush1.msra.mxu0 0.0
        %443 = vmatprep.subr.mxu0 0.0
        %444 = vmatpush1.msra.mxu0 0.0
        %445 = vmatprep.subr.mxu0 0.0
        %446 = vmatpush1.msra.mxu0 0.0
        %447 = vmatprep.subr.mxu0 0.0
        %448 = vmatpush1.msra.mxu0 %v418
        %449 = vmatprep.subr.mxu0 0.0
        %450 = vmatpush1.msra.mxu0 %v417
        %451 = vmatprep.subr.mxu0 0.0
        %452 = vmatpush2.msra.mxu0 0.0
        %453 = vmatprep.subr.mxu0 0.0
        %454 = vmatpush2.msra.mxu0 0.0
        %455 = vmatprep.subr.mxu0 0.0
        %456 = vmatpush2.msra.mxu0 0.0
        %457 = vmatprep.subr.mxu0 0.0
        %458 = vmatpush2.msra.mxu0 0.0
        %459 = vmatprep.subr.mxu0 0.0
        %460 = vmatpush2.msra.mxu0 0.0
        %461 = vmatprep.subr.mxu0 0.0
        %462 = vmatpush2.msra.mxu0 0.0
        %463 = vmatprep.subr.mxu0 0.0
        %464 = vmatpush2.msra.mxu0 0.0
        %465 = vmatprep.subr.mxu0 0.0
        %466 = vmatpush2.msra.mxu0 0.0
        %467 = vmatprep.subr.mxu0 0.0
        %468 = vmatpush2.msra.mxu0 0.0
        %469 = vmatprep.subr.mxu0 0.0
        %470 = vmatpush2.msra.mxu0 0.0
        %471 = vmatprep.subr.mxu0 0.0
        %472 = vmatpush2.msra.mxu0 0.0
        %473 = vmatprep.subr.mxu0 0.0
        %474 = vmatpush2.msra.mxu0 0.0
        %475 = vmatprep.subr.mxu0 0.0
        %476 = vmatpush2.msra.mxu0 0.0
        %477 = vmatprep.subr.mxu0 0.0
        %478 = vmatpush2.msra.mxu0 0.0
        %479 = vmatprep.subr.mxu0 0.0
        %480 = vmatpush2.msra.mxu0 0.0
        %481 = vmatprep.subr.mxu0 0.0
        %482 = vmatpush2.msra.mxu0 0.0
        %483 = vmatprep.mubr.f32.mxu0 0.0
        %484 = vmatmul.mubr.f32.gmra.mxu0 %v193
        %v485 = vpop.f32.mrf.mxu0
        %v486 = vadd.f32 0.0, %v485
        %v487 = vpop.f32.mrf.mxu0
        %488 = vmatprep.mubr.f32.mxu0 0.0
        %489 = vmatmul.mubr.f32.gmra.mxu0 %v196
        %v490 = vpop.f32.mrf.mxu0
        %v491 = vadd.f32 0.0, %v490
        %v492 = vpop.f32.mrf.mxu0
        %493 = vmatprep.mubr.f32.mxu0 0.0
        %494 = vmatmul.mubr.f32.gmra.mxu0 %v199
        %v495 = vpop.f32.mrf.mxu0
        %v496 = vadd.f32 0.0, %v495
        %v497 = vpop.f32.mrf.mxu0
        %498 = vmatprep.mubr.f32.mxu0 0.0
        %499 = vmatmul.mubr.f32.gmra.mxu0 %v202
        %v500 = vpop.f32.mrf.mxu0
        %v501 = vadd.f32 0.0, %v500
        %v502 = vpop.f32.mrf.mxu0
        %503 = vmatprep.mubr.f32.mxu0 0.0
        %504 = vmatmul.mubr.f32.gmra.mxu0 %v205
        %v505 = vpop.f32.mrf.mxu0
        %v506 = vadd.f32 0.0, %v505
        %v507 = vpop.f32.mrf.mxu0
        %508 = vmatprep.mubr.f32.mxu0 0.0
        %509 = vmatmul.mubr.f32.gmra.mxu0 %v208
        %v510 = vpop.f32.mrf.mxu0
        %v511 = vadd.f32 0.0, %v510
        %v512 = vpop.f32.mrf.mxu0
        %513 = vdwg.mxu0
        %s514 = scalar_lea.vmem %s180, 32 [#allocation5]
        %515 = vst.msk [vmem:[%s514] sm:$0xff] %vm191, %v486
        %516 = vst.msk [vmem:[%s514 + $0x8] sm:$0xff] %vm191, %v491
        %517 = vst.msk [vmem:[%s514 + $0x40] sm:$0xff] %vm191, %v496
        %518 = vst.msk [vmem:[%s514 + $0x48] sm:$0xff] %vm191, %v501
        %519 = vst.msk [vmem:[%s514 + $0x80] sm:$0xff] %vm191, %v506
        %520 = vst.msk [vmem:[%s514 + $0x88] sm:$0xff] %vm191, %v511
        %s521 = scalar_lea.vmem %s160, 48 [#allocation2]
        %v522 = vld [vmem:[%s521] sm:$0xff]
        %v523 = vld [vmem:[%s521 + $0x8] sm:$0xff]
        %524 = vmatprep.subr.mxu0 0.0
        %525 = vmatpush1.msra.mxu0 0.0
        %526 = vmatprep.subr.mxu0 0.0
        %527 = vmatpush1.msra.mxu0 0.0
        %528 = vmatprep.subr.mxu0 0.0
        %529 = vmatpush1.msra.mxu0 0.0
        %530 = vmatprep.subr.mxu0 0.0
        %531 = vmatpush1.msra.mxu0 0.0
        %532 = vmatprep.subr.mxu0 0.0
        %533 = vmatpush1.msra.mxu0 0.0
        %534 = vmatprep.subr.mxu0 0.0
        %535 = vmatpush1.msra.mxu0 0.0
        %536 = vmatprep.subr.mxu0 0.0
        %537 = vmatpush1.msra.mxu0 0.0
        %538 = vmatprep.subr.mxu0 0.0
        %539 = vmatpush1.msra.mxu0 0.0
        %540 = vmatprep.subr.mxu0 0.0
        %541 = vmatpush1.msra.mxu0 0.0
        %542 = vmatprep.subr.mxu0 0.0
        %543 = vmatpush1.msra.mxu0 0.0
        %544 = vmatprep.subr.mxu0 0.0
        %545 = vmatpush1.msra.mxu0 0.0
        %546 = vmatprep.subr.mxu0 0.0
        %547 = vmatpush1.msra.mxu0 0.0
        %548 = vmatprep.subr.mxu0 0.0
        %549 = vmatpush1.msra.mxu0 0.0
        %550 = vmatprep.subr.mxu0 0.0
        %551 = vmatpush1.msra.mxu0 0.0
        %552 = vmatprep.subr.mxu0 0.0
        %553 = vmatpush1.msra.mxu0 %v523
        %554 = vmatprep.subr.mxu0 0.0
        %555 = vmatpush1.msra.mxu0 %v522
        %556 = vmatprep.subr.mxu0 0.0
        %557 = vmatpush2.msra.mxu0 0.0
        %558 = vmatprep.subr.mxu0 0.0
        %559 = vmatpush2.msra.mxu0 0.0
        %560 = vmatprep.subr.mxu0 0.0
        %561 = vmatpush2.msra.mxu0 0.0
        %562 = vmatprep.subr.mxu0 0.0
        %563 = vmatpush2.msra.mxu0 0.0
        %564 = vmatprep.subr.mxu0 0.0
        %565 = vmatpush2.msra.mxu0 0.0
        %566 = vmatprep.subr.mxu0 0.0
        %567 = vmatpush2.msra.mxu0 0.0
        %568 = vmatprep.subr.mxu0 0.0
        %569 = vmatpush2.msra.mxu0 0.0
        %570 = vmatprep.subr.mxu0 0.0
        %571 = vmatpush2.msra.mxu0 0.0
        %572 = vmatprep.subr.mxu0 0.0
        %573 = vmatpush2.msra.mxu0 0.0
        %574 = vmatprep.subr.mxu0 0.0
        %575 = vmatpush2.msra.mxu0 0.0
        %576 = vmatprep.subr.mxu0 0.0
        %577 = vmatpush2.msra.mxu0 0.0
        %578 = vmatprep.subr.mxu0 0.0
        %579 = vmatpush2.msra.mxu0 0.0
        %580 = vmatprep.subr.mxu0 0.0
        %581 = vmatpush2.msra.mxu0 0.0
        %582 = vmatprep.subr.mxu0 0.0
        %583 = vmatpush2.msra.mxu0 0.0
        %584 = vmatprep.subr.mxu0 0.0
        %585 = vmatpush2.msra.mxu0 0.0
        %586 = vmatprep.subr.mxu0 0.0
        %587 = vmatpush2.msra.mxu0 0.0
        %588 = vmatprep.mubr.f32.mxu0 0.0
        %589 = vmatmul.mubr.f32.gmra.mxu0 %v193
        %v590 = vpop.f32.mrf.mxu0
        %v591 = vadd.f32 0.0, %v590
        %v592 = vpop.f32.mrf.mxu0
        %593 = vmatprep.mubr.f32.mxu0 0.0
        %594 = vmatmul.mubr.f32.gmra.mxu0 %v196
        %v595 = vpop.f32.mrf.mxu0
        %v596 = vadd.f32 0.0, %v595
        %v597 = vpop.f32.mrf.mxu0
        %598 = vmatprep.mubr.f32.mxu0 0.0
        %599 = vmatmul.mubr.f32.gmra.mxu0 %v199
        %v600 = vpop.f32.mrf.mxu0
        %v601 = vadd.f32 0.0, %v600
        %v602 = vpop.f32.mrf.mxu0
        %603 = vmatprep.mubr.f32.mxu0 0.0
        %604 = vmatmul.mubr.f32.gmra.mxu0 %v202
        %v605 = vpop.f32.mrf.mxu0
        %v606 = vadd.f32 0.0, %v605
        %v607 = vpop.f32.mrf.mxu0
        %608 = vmatprep.mubr.f32.mxu0 0.0
        %609 = vmatmul.mubr.f32.gmra.mxu0 %v205
        %v610 = vpop.f32.mrf.mxu0
        %v611 = vadd.f32 0.0, %v610
        %v612 = vpop.f32.mrf.mxu0
        %613 = vmatprep.mubr.f32.mxu0 0.0
        %614 = vmatmul.mubr.f32.gmra.mxu0 %v208
        %v615 = vpop.f32.mrf.mxu0
        %v616 = vadd.f32 0.0, %v615
        %v617 = vpop.f32.mrf.mxu0
        %618 = vdwg.mxu0
        %s619 = scalar_lea.vmem %s180, 48 [#allocation5]
        %620 = vst.msk [vmem:[%s619] sm:$0xff] %vm191, %v591
        %621 = vst.msk [vmem:[%s619 + $0x8] sm:$0xff] %vm191, %v596
        %622 = vst.msk [vmem:[%s619 + $0x40] sm:$0xff] %vm191, %v601
        %623 = vst.msk [vmem:[%s619 + $0x48] sm:$0xff] %vm191, %v606
        %624 = vst.msk [vmem:[%s619 + $0x80] sm:$0xff] %vm191, %v611
        %625 = vst.msk [vmem:[%s619 + $0x88] sm:$0xff] %vm191, %v616
        %s626 = sand.u32 %s90, 1
        %s627 = scalar_lea.sflag [#allocation4], %s626
        %s628 = sand.u32 %s90, 1
        %s629 = smul.addr %s628, 192
        %s630 = scalar_lea.vmem [#allocation5], %s629
        // Predicated region
        $region33: #{tpu_custom_call.1} parent=27 // pred_check
          %p631 = pneg %p100
        $region34: #{tpu_custom_call.1} parent=27 // pred_check_branch
          %633 = sbr.rel (%p631) target = $region36
        $region35: #{tpu_custom_call.1} parent=27 // pred_region
          %s634 = smul.u32 4, %s24
          %s636 = ssub.s32 3072, 3072
          %637 = vsyncadd %s627, %s636
          %s638 = smul.addr %s634, 2
          %s639 = smul.addr %s23, 24
          %s640 = sadd.s32 %s638, %s639
          %s641 = smul.addr %s640, 128
          %s642 = scalar_lea.hbm %s2, %s641
          %s643 = sshll.u32 %s630, 4
          %s644 = int_to_ptr.vmem [resolvable:$true] %s643
          %649 = dma.vmem_to_hbm [thread:$0]  %s644, 3072, %s642, %s627, 128, 128, 8
        $region36: #{tpu_custom_call.1} parent=27 // pred_fallthru
          _
      $region28: #{tpu_custom_call.1} parent=5 // pred_fallthru
        _
      %p650 = scmp.le.s32.totalorder 2, %s14
      // Predicated region
      $region37: #{tpu_custom_call.1} parent=5 // pred_check
        %p651 = pneg %p650
      $region38: #{tpu_custom_call.1} parent=5 // pred_check_branch
        %653 = sbr.rel (%p651) target = $region40
      $region39: #{tpu_custom_call.1} parent=5 // pred_region
        %s654 = ssub.s32 %s14, 2
        // Predicated region
        $region41: #{tpu_custom_call.1} parent=39 // pred_check
          %p655 = pneg %p106
        $region42: #{tpu_custom_call.1} parent=39 // pred_check_branch
          %657 = sbr.rel (%p655) target = $region44
        $region43: #{tpu_custom_call.1} parent=39 // pred_region
          %s658 = sand.u32 %s91, 1
          %s659 = scalar_lea.sflag [#allocation4], %s658
          %s660 = sand.u32 %s91, 1
          %s661 = smul.addr %s660, 192
          %s662 = scalar_lea.vmem [#allocation5], %s661
          %663 = dma.done %s659, 3072
        $region44: #{tpu_custom_call.1} parent=39 // pred_fallthru
          _
      $region40: #{tpu_custom_call.1} parent=5 // pred_fallthru
        _
    $region6: #{tpu_custom_call.1} parent=1 // loop_footer
      %s18 = sadd.s32 1, %s14
    $region7: #{tpu_custom_call.1} parent=1 // loop_footer_branch
      %13 = sbr.rel target = $region3
    $region8: #{tpu_custom_call.1} parent=1 // loop_exit
      _
    %664 = vsyncpa [#allocation3], 1
    %s665 = scalar_lea.sflag [#allocation3], 1
    %666 = vsyncpa %s665, 1
    %667 = vsyncpa [#allocation4], 1
    %s668 = scalar_lea.sflag [#allocation4], 1
    %669 = vsyncpa %s668, 1

</llo_original>
